<compile_context>
chip_gen: v7x
topology: tpu7x:2x2x1
jax: 0.10.0
libtpu: 0.0.40
codegen_flags: <defaults>
</compile_context>

<pallas_src>
import math
import functools

import jax
import jax.numpy as jnp
from jax.experimental import pallas as pl
from jax.experimental.pallas import tpu as pltpu


_LANE = 128
_MAX_TILE_N = 8192                       # keeps double-buffered tiles well inside v7x's 64 MiB VMEM
_VMEM_TILE_BUDGET = 24 * 1024 * 1024     # target working set for tile sizing (all generations)


def _round_up(v, m):
    return ((v + m - 1) // m) * m


def _pick_tile_n(batch, label_num, n):
    # per-column bytes: double-buffered x (f32) + mhm_t (bf16) tiles + live expx vregs
    per_col = 2 * (batch * 4 + label_num * 2) + batch * 4
    tile = (_VMEM_TILE_BUDGET // per_col // _LANE) * _LANE
    tile = max(_LANE, min(tile, _MAX_TILE_N))
    return min(tile, _round_up(n, _LANE))


def _nca_ml_ce_kernel(x_ref, mhmT_ref, bmhm_ref, idx_ref, out_ref, s_acc, z_acc, *,
                      label_num: int, margin: float, batch: int, tile_n: int):
    n_idx = pl.program_id(0)

    @pl.when(n_idx == 0)
    def _():
        s_acc[...] = jnp.zeros_like(s_acc)
        z_acc[...] = jnp.zeros_like(z_acc)

    x = x_ref[...]                                               # (B, TILE_N) f32
    expx = jnp.exp(x)

    # exp.scatter_(1, indexes.view(-1,1), 0): zero the self column (globally-offset iota).
    col = n_idx * tile_n + jax.lax.broadcasted_iota(jnp.int32, x.shape, 1)
    expx = jnp.where(col == idx_ref[...], 0.0, expx)

    # s_il += sum_j expx_ij * mhm_t[l, j]   -- MXU contraction over the N tile, tiny (B, L) result.
    mhm = mhmT_ref[...].astype(jnp.float32)                      # (L, TILE_N)
    s_acc[...] += jax.lax.dot_general(
        expx, mhm, dimension_numbers=(((1,), (1,)), ((), ())),
        preferred_element_type=jnp.float32)
    z_acc[...] += jnp.sum(expx, axis=1, keepdims=True)           # (B, 1)

    @pl.when(n_idx == pl.num_programs(0) - 1)
    def _():
        L = float(label_num)
        s = s_acc[...]                                           # (B, L)
        Z = z_acc[...]                                           # (B, 1)
        # p_i = sum_j expx_ij * (overlap_ij + L) / (2L) = (sum_l bmhm_il * s_il + L*Z_i) / (2L)
        p = (jnp.sum(bmhm_ref[...] * s, axis=1, keepdims=True) + L * Z) * (0.5 / L)
        Z_exclude = Z - p
        p = p * (1.0 / math.exp(margin))
        Zf = Z_exclude + p
        prob = p / Zf                                            # (B, 1)
        # masked_select(prob, prob != 0).log().sum()
        log_prob = jnp.where(prob != 0.0, jnp.log(prob), 0.0)
        out_ref[...] = -jnp.sum(log_prob, axis=0, keepdims=True) / float(batch)


def make_nca_ml_cross_entropy(multi_hot_mtx, margin=0.0, tile_n=None):
    """Mirror of NCA_ML_CrossEntropy: store the label matrix once, return forward(x, indexes)."""
    mhm = jnp.asarray(multi_hot_mtx, dtype=jnp.float32)
    mhm = jnp.where(mhm == 0, -1.0, mhm)                         # __init__: 0 -> -1
    n, label_num = mhm.shape
    # Hoisted once: transposed, lane-dense (L, N), stored bf16 (+-1 exact -> no precision loss,
    # halves the dominant HBM stream of this memory-bound kernel).
    mhm_t_bf16 = mhm.T.astype(jnp.bfloat16)

    if tile_n is not None and tile_n % _LANE != 0:
        raise ValueError("tile_n must be a multiple of 128")

    @jax.jit
    def forward(x, indexes):
        batch = x.shape[0]
        tn = tile_n if tile_n is not None else _pick_tile_n(batch, label_num, n)
        n_pad = _round_up(n, tn)

        x_p = x.astype(jnp.float32)
        mhm_p = mhm_t_bf16
        if n_pad != n:
            # exp(-1e30) == 0.0 exactly, so padded columns contribute nothing to s or Z.
            x_p = jnp.pad(x_p, ((0, 0), (0, n_pad - n)), constant_values=-1e30)
            mhm_p = jnp.pad(mhm_p, ((0, 0), (0, n_pad - n)))

        bmhm = jnp.take(mhm, indexes, axis=0)                    # (B, L) f32 (glue gather)
        idx2d = indexes.reshape(batch, 1).astype(jnp.int32)      # (B, 1)

        kernel = functools.partial(_nca_ml_ce_kernel, label_num=label_num,
                                   margin=float(margin), batch=batch, tile_n=tn)

        out = pl.pallas_call(
            kernel,
            out_shape=jax.ShapeDtypeStruct((1, 1), jnp.float32),
            grid_spec=pltpu.PrefetchScalarGridSpec(
                num_scalar_prefetch=0,
                grid=(n_pad // tn,),
                in_specs=[
                    pl.BlockSpec((batch, tn), lambda i: (0, i)),          # x tile
                    pl.BlockSpec((label_num, tn), lambda i: (0, i)),      # mhm_t tile (bf16)
                    pl.BlockSpec((batch, label_num), lambda i: (0, 0)),   # bmhm, resident
                    pl.BlockSpec((batch, 1), lambda i: (0, 0)),           # idx, resident
                ],
                out_specs=pl.BlockSpec((1, 1), lambda i: (0, 0)),         # loss accumulator
                scratch_shapes=[
                    pltpu.VMEM((batch, label_num), jnp.float32),          # s accumulator
                    pltpu.VMEM((batch, 1), jnp.float32),                  # Z accumulator
                ],
            ),
            compiler_params=pltpu.CompilerParams(
                dimension_semantics=("arbitrary",),                       # N axis is a reduction
                vmem_limit_bytes=48 * 1024 * 1024,
            ),
        )(x_p, mhm_p, bmhm, idx2d)
        return out[0, 0]

    return forward


def nca_ml_cross_entropy_ref(x, indexes, multi_hot_mtx, margin=0.0):
    """Pure-JAX reference mirroring the PyTorch forward."""
    mhm = jnp.asarray(multi_hot_mtx, dtype=jnp.float32)
    mhm = jnp.where(mhm == 0, -1.0, mhm)
    B = x.shape[0]
    L = mhm.shape[1]
    expx = jnp.exp(x)
    expx = expx.at[jnp.arange(B), indexes].set(0.0)
    bmhm = mhm[indexes]
    out = bmhm @ mhm.T
    weights = (out + L) / 2.0 / L
    p = (expx * weights).sum(axis=1)
    Z = expx.sum(axis=1)
    Z_exclude = Z - p
    p = p / math.exp(margin)
    Z = Z_exclude + p
    prob = p / Z
    logp = jnp.where(prob != 0.0, jnp.log(prob), 0.0)
    return -logp.sum() / B


if __name__ == "__main__":
    key = jax.random.PRNGKey(0)
    k1, k2, k3 = jax.random.split(key, 3)

    B, N, L = 8, 300, 16  # batch, dataset size (not a multiple of 128 -> exercises padding), labels

    # deterministic "multiHotMtx": {0,1}; the factory maps 0 -> -1 as in __init__
    mhm01 = jax.random.bernoulli(k1, 0.5, (N, L)).astype(jnp.float32)
    x = jax.random.normal(k2, (B, N), dtype=jnp.float32)
    indexes = jax.random.randint(k3, (B,), 0, N, dtype=jnp.int32)

    # (margin, forced tile) pairs: multi-tile grid with masking/padding, then auto tile (single tile)
    for margin, tn in ((0.0, 128), (0.25, None)):
        fwd = make_nca_ml_cross_entropy(mhm01, margin=margin, tile_n=tn)
        loss = jax.block_until_ready(fwd(x, indexes))
        loss_ref = nca_ml_cross_entropy_ref(x, indexes, mhm01, margin=margin)
        assert jnp.allclose(loss, loss_ref, rtol=1e-4, atol=1e-5), (margin, tn, loss, loss_ref)

    print("KERNEL_OK")
</pallas_src>

<mosaic_0001>
module attributes {stable_mosaic.version = 11 : i64} {
  func.func @_nca_ml_ce_kernel(%arg0: i32, %arg1: memref<8x128xf32, #tpu.memory_space<vmem>>, %arg2: memref<16x128xbf16, #tpu.memory_space<vmem>>, %arg3: memref<8x16xf32, #tpu.memory_space<vmem>>, %arg4: memref<8x1xi32, #tpu.memory_space<vmem>>, %arg5: memref<1x1xf32, #tpu.memory_space<vmem>>, %arg6: memref<8x16xf32, #tpu.memory_space<vmem>>, %arg7: memref<8x1xf32, #tpu.memory_space<vmem>>) attributes {dimension_semantics = [#tpu.dimension_semantics<arbitrary>], iteration_bounds = array<i64: 3>, scalar_prefetch = 0 : i64, scratch_operands = 2 : i64, tpu.core_type = #tpu.core_type<tc>, window_params = [{transform_indices = @transform_0, window_bounds = array<i64: 8, 128>}, {transform_indices = @transform_1, window_bounds = array<i64: 16, 128>}, {pipeline_mode = #tpu.pipeline_mode<synchronous>, transform_indices = @transform_2, window_bounds = array<i64: 8, 16>}, {pipeline_mode = #tpu.pipeline_mode<synchronous>, transform_indices = @transform_3, window_bounds = array<i64: 8, 1>}, {pipeline_mode = #tpu.pipeline_mode<synchronous>, transform_indices = @transform_4, window_bounds = array<i64: 1, 1>}]} {
    %c0_i32 = arith.constant 0 : i32
    %0 = arith.cmpi eq, %arg0, %c0_i32 : i32
    %1 = arith.extui %0 : i1 to i32
    %c0_i32_0 = arith.constant 0 : i32
    %2 = arith.cmpi ne, %1, %c0_i32_0 : i32
    scf.if %2 {
      %cst_17 = arith.constant 0.000000e+00 : f32
      %28 = vector.broadcast %cst_17 : f32 to vector<8x16xf32>
      %c0_18 = arith.constant 0 : index
      %c0_19 = arith.constant 0 : index
      %29 = vector.load %arg6[%c0_18, %c0_19] : memref<8x16xf32, #tpu.memory_space<vmem>>, vector<8x16xf32>
      tpu.vector_store %arg6[%c0_18, %c0_19], %28 {strides = array<i32>} : memref<8x16xf32, #tpu.memory_space<vmem>>, vector<8x16xf32>,
      %cst_20 = arith.constant 0.000000e+00 : f32
      %30 = vector.broadcast %cst_20 : f32 to vector<8x1xf32>
      %c0_21 = arith.constant 0 : index
      %c0_22 = arith.constant 0 : index
      %31 = vector.load %arg7[%c0_21, %c0_22] : memref<8x1xf32, #tpu.memory_space<vmem>>, vector<8x1xf32>
      tpu.vector_store %arg7[%c0_21, %c0_22], %30 {strides = array<i32>} : memref<8x1xf32, #tpu.memory_space<vmem>>, vector<8x1xf32>,
    } else {
    }
    %c0 = arith.constant 0 : index
    %c0_1 = arith.constant 0 : index
    %3 = vector.load %arg1[%c0, %c0_1] : memref<8x128xf32, #tpu.memory_space<vmem>>, vector<8x128xf32>
    %4 = math.exp %3 : vector<8x128xf32>
    %c128_i32 = arith.constant 128 : i32
    %5 = arith.muli %arg0, %c128_i32 : i32
    %6 = tpu.iota {dimensions = array<i32: 1>} : vector<8x128xi32>
    %7 = vector.broadcast %5 : i32 to vector<8x128xi32>
    %8 = arith.addi %7, %6 : vector<8x128xi32>
    %c0_2 = arith.constant 0 : index
    %c0_3 = arith.constant 0 : index
    %9 = vector.load %arg4[%c0_2, %c0_3] : memref<8x1xi32, #tpu.memory_space<vmem>>, vector<8x1xi32>
    %10 = vector.broadcast %9 : vector<8x1xi32> to vector<8x128xi32>
    %11 = arith.cmpi eq, %8, %10 : vector<8x128xi32>
    %cst = arith.constant 0.000000e+00 : f32
    %12 = vector.broadcast %cst : f32 to vector<8x128xf32>
    %13 = arith.select %11, %12, %4 : vector<8x128xi1>, vector<8x128xf32>
    %c0_4 = arith.constant 0 : index
    %c0_5 = arith.constant 0 : index
    %14 = vector.load %arg2[%c0_4, %c0_5] : memref<16x128xbf16, #tpu.memory_space<vmem>>, vector<16x128xbf16>
    %15 = arith.extf %14 : vector<16x128xbf16> to vector<16x128xf32>
    %c0_6 = arith.constant 0 : index
    %c0_7 = arith.constant 0 : index
    %16 = vector.load %arg6[%c0_6, %c0_7] : memref<8x16xf32, #tpu.memory_space<vmem>>, vector<8x16xf32>
    %cst_8 = arith.constant dense<0.000000e+00> : vector<8x16xf32>
    %17 = tpu.matmul %13, %15, %cst_8 {dimension_numbers = #tpu.dot_dimension_numbers<[1], [1], [0], [0], [0, 0, 1, 0], [], []>} : vector<8x128xf32>, vector<16x128xf32>, vector<8x16xf32> -> vector<8x16xf32>
    %18 = arith.addf %16, %17 : vector<8x16xf32>
    %c0_9 = arith.constant 0 : index
    %c0_10 = arith.constant 0 : index
    %19 = vector.load %arg6[%c0_9, %c0_10] : memref<8x16xf32, #tpu.memory_space<vmem>>, vector<8x16xf32>
    tpu.vector_store %arg6[%c0_9, %c0_10], %18 {strides = array<i32>} : memref<8x16xf32, #tpu.memory_space<vmem>>, vector<8x16xf32>,
    %c0_11 = arith.constant 0 : index
    %c0_12 = arith.constant 0 : index
    %20 = vector.load %arg7[%c0_11, %c0_12] : memref<8x1xf32, #tpu.memory_space<vmem>>, vector<8x1xf32>
    %cst_13 = arith.constant dense<0.000000e+00> : vector<8xf32>
    %21 = vector.multi_reduction <add>, %13, %cst_13 [1] : vector<8x128xf32> to vector<8xf32>
    %22 = vector.shape_cast %21 : vector<8xf32> to vector<8x1xf32>
    %23 = arith.addf %20, %22 : vector<8x1xf32>
    %c0_14 = arith.constant 0 : index
    %c0_15 = arith.constant 0 : index
    %24 = vector.load %arg7[%c0_14, %c0_15] : memref<8x1xf32, #tpu.memory_space<vmem>>, vector<8x1xf32>
    tpu.vector_store %arg7[%c0_14, %c0_15], %23 {strides = array<i32>} : memref<8x1xf32, #tpu.memory_space<vmem>>, vector<8x1xf32>,
    %c2_i32 = arith.constant 2 : i32
    %25 = arith.cmpi eq, %arg0, %c2_i32 : i32
    %26 = arith.extui %25 : i1 to i32
    %c0_i32_16 = arith.constant 0 : i32
    %27 = arith.cmpi ne, %26, %c0_i32_16 : i32
    scf.if %27 {
      %c0_17 = arith.constant 0 : index
      %c0_18 = arith.constant 0 : index
      %28 = vector.load %arg6[%c0_17, %c0_18] : memref<8x16xf32, #tpu.memory_space<vmem>>, vector<8x16xf32>
      %c0_19 = arith.constant 0 : index
      %c0_20 = arith.constant 0 : index
      %29 = vector.load %arg7[%c0_19, %c0_20] : memref<8x1xf32, #tpu.memory_space<vmem>>, vector<8x1xf32>
      %c0_21 = arith.constant 0 : index
      %c0_22 = arith.constant 0 : index
      %30 = vector.load %arg3[%c0_21, %c0_22] : memref<8x16xf32, #tpu.memory_space<vmem>>, vector<8x16xf32>
      %31 = arith.mulf %30, %28 : vector<8x16xf32>
      %cst_23 = arith.constant dense<0.000000e+00> : vector<8xf32>
      %32 = vector.multi_reduction <add>, %31, %cst_23 [1] : vector<8x16xf32> to vector<8xf32>
      %33 = vector.shape_cast %32 : vector<8xf32> to vector<8x1xf32>
      %cst_24 = arith.constant 1.600000e+01 : f32
      %34 = vector.broadcast %cst_24 : f32 to vector<8x1xf32>
      %35 = arith.mulf %34, %29 : vector<8x1xf32>
      %36 = arith.addf %33, %35 : vector<8x1xf32>
      %cst_25 = arith.constant 3.125000e-02 : f32
      %37 = vector.broadcast %cst_25 : f32 to vector<8x1xf32>
      %38 = arith.mulf %36, %37 : vector<8x1xf32>
      %39 = arith.subf %29, %38 : vector<8x1xf32>
      %cst_26 = arith.constant 1.000000e+00 : f32
      %40 = vector.broadcast %cst_26 : f32 to vector<8x1xf32>
      %41 = arith.mulf %38, %40 : vector<8x1xf32>
      %42 = arith.addf %39, %41 : vector<8x1xf32>
      %43 = arith.divf %41, %42 : vector<8x1xf32>
      %cst_27 = arith.constant 0.000000e+00 : f32
      %44 = vector.broadcast %cst_27 : f32 to vector<8x1xf32>
      %45 = arith.cmpf one, %43, %44 : vector<8x1xf32>
      %46 = math.log %43 : vector<8x1xf32>
      %cst_28 = arith.constant 0.000000e+00 : f32
      %47 = vector.broadcast %cst_28 : f32 to vector<8x1xf32>
      %48 = arith.select %45, %46, %47 : vector<8x1xi1>, vector<8x1xf32>
      %cst_29 = arith.constant dense<0.000000e+00> : vector<1xf32>
      %49 = vector.multi_reduction <add>, %48, %cst_29 [0] : vector<8x1xf32> to vector<1xf32>
      %50 = vector.shape_cast %49 : vector<1xf32> to vector<1x1xf32>
      %cst_30 = arith.constant 0.000000e+00 : f32
      %51 = vector.broadcast %cst_30 : f32 to vector<1x1xf32>
      %52 = arith.subf %51, %50 : vector<1x1xf32>
      %cst_31 = arith.constant 8.000000e+00 : f32
      %53 = vector.broadcast %cst_31 : f32 to vector<1x1xf32>
      %54 = arith.divf %52, %53 : vector<1x1xf32>
      %c0_32 = arith.constant 0 : index
      %c0_33 = arith.constant 0 : index
      %55 = vector.load %arg5[%c0_32, %c0_33] : memref<1x1xf32, #tpu.memory_space<vmem>>, vector<1x1xf32>
      tpu.vector_store %arg5[%c0_32, %c0_33], %54 {strides = array<i32>} : memref<1x1xf32, #tpu.memory_space<vmem>>, vector<1x1xf32>,
    } else {
    }
    return
  }
  func.func @transform_0(%arg0: i32) -> (i32, i32) {
    %c0_i32 = arith.constant 0 : i32
    %c0_i32_0 = arith.constant 0 : i32
    return %c0_i32, %arg0 : i32, i32
  }
  func.func @transform_1(%arg0: i32) -> (i32, i32) {
    %c0_i32 = arith.constant 0 : i32
    %c0_i32_0 = arith.constant 0 : i32
    return %c0_i32, %arg0 : i32, i32
  }
  func.func @transform_2(%arg0: i32) -> (i32, i32) {
    %c0_i32 = arith.constant 0 : i32
    %c0_i32_0 = arith.constant 0 : i32
    %c0_i32_1 = arith.constant 0 : i32
    return %c0_i32, %c0_i32_0 : i32, i32
  }
  func.func @transform_3(%arg0: i32) -> (i32, i32) {
    %c0_i32 = arith.constant 0 : i32
    %c0_i32_0 = arith.constant 0 : i32
    %c0_i32_1 = arith.constant 0 : i32
    return %c0_i32, %c0_i32_0 : i32, i32
  }
  func.func @transform_4(%arg0: i32) -> (i32, i32) {
    %c0_i32 = arith.constant 0 : i32
    %c0_i32_0 = arith.constant 0 : i32
    %c0_i32_1 = arith.constant 0 : i32
    return %c0_i32, %c0_i32_0 : i32, i32
  }
}

</mosaic_0001>

<llo_original>
// kernel: forward.1
$region0: #{forward.1}
  #allocation0 [shape = 'u32[]', space=smem, size = 0x4, offset = 0x4, fixed_abs, tag = 'smem constant byte address 0x4 - core index']
  #allocation1 [shape = 'u32[144,128]{1,0:T(1,128)}', space=vmem, size = 0x12000, scoped, tag = 'internal scratch']
  #allocation2 [shape = 'f32[8,16]{1,0:T(8,128)}', space=vmem, size = 0x1000, scoped, tag = 'scratch operand']
  #allocation3 [shape = 'f32[8,1]{1,0:T(8,128)}', space=vmem, size = 0x1000, scoped, tag = 'scratch operand']
  %s0 = inlined_call_operand.vmem [shape: f32[8,384], index: 0, kind: input, shape index: {}]
  %s1 = inlined_call_operand.vmem [shape: bf16[16,384], index: 1, kind: input, shape index: {}]
  %s2 = inlined_call_operand.vmem [shape: f32[8,16], index: 2, kind: input, shape index: {}]
  %s3 = inlined_call_operand.vmem [shape: s32[8,1], index: 3, kind: input, shape index: {}]
  %s4 = inlined_call_operand.hbm [shape: f32[1,1], index: 4, kind: output, shape index: {}]
  %s5 = sld [smem:[#allocation0]]
  $region98: #{forward.1} parent=0
    _
  %s7 = ssub.s32 1, %s5
  %s8 = scalar_select 0, %s7, %s5
  $region1: #{forward.1} parent=0
    #allocation4 [shape = 'u8[8192]{0}', space=vmem, size = 0x2000, scoped, tag = 'input window, operand 1']
    #allocation5 [shape = 'u8[512]{0}', space=vmem, size = 0x400, scoped, tag = 'output window, operand 0, single buffered']
    #allocation6 [shape = 's32[2]{0}', space=sflag, size = 0x8, scoped, tag = 'scoped memory for forward.1']
    %9 = vsyncpa [#allocation6], 0
    loop: start=0, step=1, limit=5
    $region2: #{forward.1} parent=1 // loop_pre_header
      _
    $region3: #{forward.1} parent=1 // loop_header
      %s11 = sphi 0, %s15
      %p12 = scmp.ge.s32.totalorder %s11, 5
      %s21 = sphi 0, %s23
      %s24 = sphi 0, %s21
      %s25 = sphi 0, %s24
      %s41 = sphi 0, %s25
      %s47 = sphi 0, %s49
      %s50 = sphi 0, %s47
      %s51 = sphi 0, %s50
      %s67 = sphi 0, %s51
      %s71 = sphi 0, %s71
      %s73 = sphi 0, %s71
      %s74 = sphi 0, %s73
      %s88 = sphi 0, %s74
      %s92 = sphi 0, %s92
      %s94 = sphi 0, %s92
      %s95 = sphi 0, %s94
      %s109 = sphi 0, %s95
      %s113 = sphi 0, %s113
      %s115 = sphi 0, %s113
      %s116 = sphi 0, %s115
      %s130 = sphi 0, %s116
    $region4: #{forward.1} parent=1 // loop_header_branch
      %14 = sbr.rel (%p12) target = $region8
    $region5: #{forward.1} parent=1 // loop_body
      %s16 = ssub.s32 %s11, 1
      %s17 = ssub.s32 %s11, 2
      %s18 = sadd.s32 %s11, 1
      %s19 = ssub.s32 %s11, %s18
      %p20 = scmp.eq.s32.totalorder %s19, 0
      %s22 = sadd.s32 %s21, 1
      %s23 = scalar_select %p20, %s21, %s22
      %p26 = pneg %p20
      %p27 = scmp.eq.s32.totalorder %s11, 2
      %p28 = por %p26, %p27
      %p29 = scmp.ne.s32.totalorder %s21, %s24
      %p30 = scmp.eq.s32.totalorder %s11, 0
      %p31 = por %p29, %p30
      %p32 = scmp.ne.s32.totalorder %s21, %s24
      %p33 = scmp.eq.s32.totalorder %s16, 2
      %p34 = por %p32, %p33
      %p35 = scmp.ne.s32.totalorder %s24, %s25
      %p36 = scmp.eq.s32.totalorder %s16, 0
      %p37 = por %p35, %p36
      %p38 = scmp.ne.s32.totalorder %s24, %s25
      %p39 = scmp.eq.s32.totalorder %s17, 2
      %p40 = por %p38, %p39
      %p42 = scmp.ne.s32.totalorder %s25, %s41
      %p43 = scmp.eq.s32.totalorder %s17, 0
      %p44 = por %p42, %p43
      %s45 = ssub.s32 %s11, %s18
      %p46 = scmp.eq.s32.totalorder %s45, 0
      %s48 = sadd.s32 %s47, 1
      %s49 = scalar_select %p46, %s47, %s48
      %p52 = pneg %p46
      %p53 = scmp.eq.s32.totalorder %s11, 2
      %p54 = por %p52, %p53
      %p55 = scmp.ne.s32.totalorder %s47, %s50
      %p56 = scmp.eq.s32.totalorder %s11, 0
      %p57 = por %p55, %p56
      %p58 = scmp.ne.s32.totalorder %s47, %s50
      %p59 = scmp.eq.s32.totalorder %s16, 2
      %p60 = por %p58, %p59
      %p61 = scmp.ne.s32.totalorder %s50, %s51
      %p62 = scmp.eq.s32.totalorder %s16, 0
      %p63 = por %p61, %p62
      %p64 = scmp.ne.s32.totalorder %s50, %s51
      %p65 = scmp.eq.s32.totalorder %s17, 2
      %p66 = por %p64, %p65
      %p68 = scmp.ne.s32.totalorder %s51, %s67
      %p69 = scmp.eq.s32.totalorder %s17, 0
      %p70 = por %p68, %p69
      %s72 = sadd.s32 %s71, 1
      %p75 = scmp.eq.s32.totalorder %s11, 2
      %p76 = scmp.ne.s32.totalorder %s71, %s73
      %p77 = scmp.eq.s32.totalorder %s11, 0
      %p78 = por %p76, %p77
      %p79 = scmp.ne.s32.totalorder %s71, %s73
      %p80 = scmp.eq.s32.totalorder %s16, 2
      %p81 = por %p79, %p80
      %p82 = scmp.ne.s32.totalorder %s73, %s74
      %p83 = scmp.eq.s32.totalorder %s16, 0
      %p84 = por %p82, %p83
      %p85 = scmp.ne.s32.totalorder %s73, %s74
      %p86 = scmp.eq.s32.totalorder %s17, 2
      %p87 = por %p85, %p86
      %p89 = scmp.ne.s32.totalorder %s74, %s88
      %p90 = scmp.eq.s32.totalorder %s17, 0
      %p91 = por %p89, %p90
      %s93 = sadd.s32 %s92, 1
      %p96 = scmp.eq.s32.totalorder %s11, 2
      %p97 = scmp.ne.s32.totalorder %s92, %s94
      %p98 = scmp.eq.s32.totalorder %s11, 0
      %p99 = por %p97, %p98
      %p100 = scmp.ne.s32.totalorder %s92, %s94
      %p101 = scmp.eq.s32.totalorder %s16, 2
      %p102 = por %p100, %p101
      %p103 = scmp.ne.s32.totalorder %s94, %s95
      %p104 = scmp.eq.s32.totalorder %s16, 0
      %p105 = por %p103, %p104
      %p106 = scmp.ne.s32.totalorder %s94, %s95
      %p107 = scmp.eq.s32.totalorder %s17, 2
      %p108 = por %p106, %p107
      %p110 = scmp.ne.s32.totalorder %s95, %s109
      %p111 = scmp.eq.s32.totalorder %s17, 0
      %p112 = por %p110, %p111
      %s114 = sadd.s32 %s113, 1
      %p117 = scmp.eq.s32.totalorder %s11, 2
      %p118 = scmp.ne.s32.totalorder %s113, %s115
      %p119 = scmp.eq.s32.totalorder %s11, 0
      %p120 = por %p118, %p119
      %p121 = scmp.ne.s32.totalorder %s113, %s115
      %p122 = scmp.eq.s32.totalorder %s16, 2
      %p123 = por %p121, %p122
      %p124 = scmp.ne.s32.totalorder %s115, %s116
      %p125 = scmp.eq.s32.totalorder %s16, 0
      %p126 = por %p124, %p125
      %p127 = scmp.ne.s32.totalorder %s115, %s116
      %p128 = scmp.eq.s32.totalorder %s17, 2
      %p129 = por %p127, %p128
      %p131 = scmp.ne.s32.totalorder %s116, %s130
      %p132 = scmp.eq.s32.totalorder %s17, 0
      %p133 = por %p131, %p132
      %p134 = scmp.le.s32.totalorder 1, %s11
      %p135 = scmp.lt.s32.totalorder %s11, 4
      %p136 = pnand %p134, %p135
      %p137 = pneg %p136
      // Predicated region
      $region9: #{forward.1} parent=5 // pred_check
        _
      $region10: #{forward.1} parent=5 // pred_check_branch
        %139 = sbr.rel (%p136) target = $region12
      $region11: #{forward.1} parent=5 // pred_region
        %s140 = ssub.s32 %s11, 1
        // Predicated region
        $region13: #{forward.1} parent=11 // pred_check
          %p141 = pneg %p84
        $region14: #{forward.1} parent=11 // pred_check_branch
          %143 = sbr.rel (%p141) target = $region16
        $region15: #{forward.1} parent=11 // pred_region
          _
        $region16: #{forward.1} parent=11 // pred_fallthru
          _
        // Predicated region
        $region17: #{forward.1} parent=11 // pred_check
          %p144 = pneg %p105
        $region18: #{forward.1} parent=11 // pred_check_branch
          %146 = sbr.rel (%p144) target = $region20
        $region19: #{forward.1} parent=11 // pred_region
          _
        $region20: #{forward.1} parent=11 // pred_fallthru
          _
      $region12: #{forward.1} parent=5 // pred_fallthru
        _
      %p147 = scmp.lt.s32.totalorder %s11, 3
      // Predicated region
      $region21: #{forward.1} parent=5 // pred_check
        %p148 = pneg %p147
      $region22: #{forward.1} parent=5 // pred_check_branch
        %150 = sbr.rel (%p148) target = $region24
      $region23: #{forward.1} parent=5 // pred_region
        // Predicated region
        $region25: #{forward.1} parent=23 // pred_check
          %p151 = pneg %p31
        $region26: #{forward.1} parent=23 // pred_check_branch
          %153 = sbr.rel (%p151) target = $region28
        $region27: #{forward.1} parent=23 // pred_region
          %p154 = scmp.lt.s32.totalorder %s11, 2
          %s155 = scalar_select %p154, %s11, 2
          %s156 = smul.addr %s155, 8
          %s157 = scalar_lea.vmem %s0, %s156
        $region28: #{forward.1} parent=23 // pred_fallthru
          _
        // Predicated region
        $region29: #{forward.1} parent=23 // pred_check
          %p158 = pneg %p57
        $region30: #{forward.1} parent=23 // pred_check_branch
          %160 = sbr.rel (%p158) target = $region32
        $region31: #{forward.1} parent=23 // pred_region
          %s161 = sand.u32 %s47, 1
          %s162 = sand.u32 %s47, 1
          %s163 = smul.addr %s162, 8
          %s164 = scalar_lea.vmem [#allocation4], %s163
          %s165 = smul.addr %s11, 4
          %s166 = scalar_lea.vmem %s1, %s165
          // Predicated region
          $region33: #{forward.1} parent=31 // pred_check
            _
          $region34: #{forward.1} parent=31 // pred_check_branch
            %168 = sbr.rel (0) target = $region36
          $region35: #{forward.1} parent=31 // pred_region
            // Predicated region
            $region37: #{forward.1} parent=35 // pred_check
              _
            $region38: #{forward.1} parent=35 // pred_check_branch
              %170 = sbr.rel target = $region40
            $region39: #{forward.1} parent=35 // pred_region
              // Predicated region
              $region52: #{forward.1} parent=39 // pred_check
                _
              $region53: #{forward.1} parent=39 // pred_check_branch
                %187 = sbr.rel (0) target = $region55
              $region54: #{forward.1} parent=39 // pred_region
                loop: start=0, step=1, limit=1
                $region56: #{forward.1} parent=54 // loop_pre_header
                  _
                $region57: #{forward.1} parent=54 // loop_header
                  %s189 = sphi 0, %s193
                  %p190 = scmp.ge.s32.totalorder %s189, 1
                  %s194 = sphi %s166, %s166
                  %s195 = sphi %s164, %s164
                $region58: #{forward.1} parent=54 // loop_header_branch
                  %192 = sbr.rel (%p190) target = $region62
                $region59: #{forward.1} parent=54 // loop_body
                  _
                $region60: #{forward.1} parent=54 // loop_footer
                  %s193 = sadd.s32 1, %s189
                $region61: #{forward.1} parent=54 // loop_footer_branch
                  %188 = sbr.rel target = $region57
                $region62: #{forward.1} parent=54 // loop_exit
                  _
                loop: start=0, step=1, limit=1
                $region63: #{forward.1} parent=54 // loop_pre_header
                  _
                $region64: #{forward.1} parent=54 // loop_header
                  %s198 = sphi 0, %s202
                  %p199 = scmp.ge.s32.totalorder %s198, 1
                  %s203 = sphi %s166, %s166
                  %s204 = sphi %s164, %s164
                $region65: #{forward.1} parent=54 // loop_header_branch
                  %201 = sbr.rel (%p199) target = $region69
                $region66: #{forward.1} parent=54 // loop_body
                  %v205 = vld [vmem:[%s203] sm:$0xf]
                  %206 = vst [vmem:[%s204] sm:$0xf] %v205
                  %v207 = vld [vmem:[%s203 + $0xc] sm:$0xf]
                  %208 = vst [vmem:[%s204 + $0x4] sm:$0xf] %v207
                $region67: #{forward.1} parent=54 // loop_footer
                  %s202 = sadd.s32 1, %s198
                $region68: #{forward.1} parent=54 // loop_footer_branch
                  %197 = sbr.rel target = $region64
                $region69: #{forward.1} parent=54 // loop_exit
                  _
              $region55: #{forward.1} parent=39 // pred_fallthru
                _
            $region40: #{forward.1} parent=35 // pred_fallthru
              _
            // Predicated region
            $region41: #{forward.1} parent=35 // pred_check
              _
            $region42: #{forward.1} parent=35 // pred_check_branch
              %172 = sbr.rel (0) target = $region44
            $region43: #{forward.1} parent=35 // pred_region
              loop: start=0, step=1, limit=1
              $region45: #{forward.1} parent=43 // loop_pre_header
                _
              $region46: #{forward.1} parent=43 // loop_header
                %s175 = sphi 0, %s179
                %p176 = scmp.ge.s32.totalorder %s175, 1
                %s180 = sphi %s166, %s166
                %s181 = sphi %s164, %s164
              $region47: #{forward.1} parent=43 // loop_header_branch
                %178 = sbr.rel (%p176) target = $region51
              $region48: #{forward.1} parent=43 // loop_body
                %v182 = vld [vmem:[%s180] sm:$0xf]
                %183 = vst [vmem:[%s181] sm:$0xf] %v182
                %v184 = vld [vmem:[%s180 + $0xc] sm:$0xf]
                %185 = vst [vmem:[%s181 + $0x4] sm:$0xf] %v184
              $region49: #{forward.1} parent=43 // loop_footer
                %s179 = sadd.s32 1, %s175
              $region50: #{forward.1} parent=43 // loop_footer_branch
                %174 = sbr.rel target = $region46
              $region51: #{forward.1} parent=43 // loop_exit
                _
            $region44: #{forward.1} parent=35 // pred_fallthru
              _
          $region36: #{forward.1} parent=31 // pred_fallthru
            _
          %209 = vnop
        $region32: #{forward.1} parent=23 // pred_fallthru
          _
      $region24: #{forward.1} parent=5 // pred_fallthru
        _
      %p210 = scmp.le.s32.totalorder 1, %s11
      %p211 = scmp.lt.s32.totalorder %s11, 4
      %p212 = pnand %p210, %p211
      %p213 = pneg %p212
      // Predicated region
      $region70: #{forward.1} parent=5 // pred_check
        _
      $region71: #{forward.1} parent=5 // pred_check_branch
        %215 = sbr.rel (%p212) target = $region73
      $region72: #{forward.1} parent=5 // pred_region
        %s216 = ssub.s32 %s11, 1
        %s217 = sand.u32 %s50, 1
        %s218 = sand.u32 %s50, 1
        %s219 = smul.addr %s218, 8
        %s220 = scalar_lea.vmem [#allocation4], %s219
        // Predicated region
        $region74: #{forward.1} parent=72 // pred_check
          %p221 = pneg %p63
        $region75: #{forward.1} parent=72 // pred_check_branch
          %223 = sbr.rel (%p221) target = $region77
        $region76: #{forward.1} parent=72 // pred_region
          _
        $region77: #{forward.1} parent=72 // pred_fallthru
          _
        %p224 = scmp.lt.s32.totalorder %s16, 2
        %s225 = scalar_select %p224, %s16, 2
        %s226 = smul.addr %s225, 8
        %s227 = scalar_lea.vmem %s0, %s226
        %p228 = pneg %p37
        %p229 = pneg %p34
        %s230 = sand.u32 %s50, 1
        %s231 = sand.u32 %s50, 1
        %s232 = smul.addr %s231, 8
        %s233 = scalar_lea.vmem [#allocation4], %s232
        %p234 = pneg %p63
        %p235 = pneg %p60
        %p236 = pneg %p84
        %p237 = pneg %p81
        %p238 = pneg %p105
        %p239 = pneg %p102
        %p240 = pneg %p126
        %p241 = pneg %p123
        %p242 = scmp.lt.s32.totalorder %s16, 2
        %s243 = scalar_select %p242, %s16, 2
        %s244 = smul.addr %s243, 8
        %s245 = scalar_lea.vmem %s0, %s244
        %p246 = scmp.eq.s32.totalorder %s16, 0
        // Predicated region
        $region78: #{forward.1} parent=72 // pred_check
          %p247 = pneg %p246
        $region79: #{forward.1} parent=72 // pred_check_branch
          %249 = sbr.rel (%p247) target = $region81
        $region80: #{forward.1} parent=72 // pred_region
          %vm250 = vcmask 130048
          %251 = vst.msk [vmem:[#allocation2] sm:$0xff] %vm250, 0.0
          %vm252 = vcmask 7168
          %253 = vst.msk [vmem:[#allocation3] sm:$0xff] %vm252, 0.0
        $region81: #{forward.1} parent=72 // pred_fallthru
          _
        %v254 = vld [vmem:[%s245] sm:$0xff]
        %v255 = vmul.f32 %v254, 1.442695
        %v256 = vpow.pop %v255
        %s257 = smul.u32 %s16, 128
        %v258 = vlaneseq
        %v259 = vand.u32 %v258, 127
        %v260 = vstv %s257
        %v261 = vadd.s32 %v260, %v259
        %v262 = vld [vmem:[%s3] sm:$0xff]
        %263 = vset.pattern.permute.xlu0 0
        %264 = vperm.xlu0 %263, %v262
        %v265 = vpop.permute.xlu0 %264
        %vm266 = vcmp.eq.s32.totalorder %v261, %v265
        %v267 = vsel %vm266, 0.0, %v256
        %v268 = vld [vmem:[%s220] sm:$0xf]
        %v269 = vld [vmem:[%s220 + $0x4] sm:$0xf]
        %v270 = vunpack.c.l.bf16 %v268
        %v271 = vunpack.c.l.bf16 %v269
        %v272 = vld [vmem:[#allocation2] sm:$0xff]
        %273 = vmatprep.subr.mxu0 0.0
        %274 = vmatpush1.xpose.msra.mxu0 %v270
        %275 = vmatprep.subr.mxu0 0.0
        %276 = vmatpush1.xpose.msra.mxu0 %v271
        %277 = vmatprep.subr.mxu0 0.0
        %278 = vmatpush1.xpose.msra.mxu0 0.0
        %279 = vmatprep.subr.mxu0 0.0
        %280 = vmatpush1.xpose.msra.mxu0 0.0
        %281 = vmatprep.subr.mxu0 0.0
        %282 = vmatpush1.xpose.msra.mxu0 0.0
        %283 = vmatprep.subr.mxu0 0.0
        %284 = vmatpush1.xpose.msra.mxu0 0.0
        %285 = vmatprep.subr.mxu0 0.0
        %286 = vmatpush1.xpose.msra.mxu0 0.0
        %287 = vmatprep.subr.mxu0 0.0
        %288 = vmatpush1.xpose.msra.mxu0 0.0
        %289 = vmatprep.subr.mxu0 0.0
        %290 = vmatpush1.xpose.msra.mxu0 0.0
        %291 = vmatprep.subr.mxu0 0.0
        %292 = vmatpush1.xpose.msra.mxu0 0.0
        %293 = vmatprep.subr.mxu0 0.0
        %294 = vmatpush1.xpose.msra.mxu0 0.0
        %295 = vmatprep.subr.mxu0 0.0
        %296 = vmatpush1.xpose.msra.mxu0 0.0
        %297 = vmatprep.subr.mxu0 0.0
        %298 = vmatpush1.xpose.msra.mxu0 0.0
        %299 = vmatprep.subr.mxu0 0.0
        %300 = vmatpush1.xpose.msra.mxu0 0.0
        %301 = vmatprep.subr.mxu0 0.0
        %302 = vmatpush1.xpose.msra.mxu0 0.0
        %303 = vmatprep.subr.mxu0 0.0
        %304 = vmatpush1.xpose.msra.mxu0 0.0
        %305 = vmatprep.subr.mxu0 0.0
        %306 = vmatpush1.xpose.msra.mxu0 0.0
        %307 = vmatprep.subr.mxu0 0.0
        %308 = vmatpush1.xpose.msra.mxu0 0.0
        %309 = vmatprep.subr.mxu0 0.0
        %310 = vmatpush1.xpose.msra.mxu0 0.0
        %311 = vmatprep.subr.mxu0 0.0
        %312 = vmatpush1.xpose.msra.mxu0 0.0
        %313 = vmatprep.subr.mxu0 0.0
        %314 = vmatpush1.xpose.msra.mxu0 0.0
        %315 = vmatprep.subr.mxu0 0.0
        %316 = vmatpush1.xpose.msra.mxu0 0.0
        %317 = vmatprep.subr.mxu0 0.0
        %318 = vmatpush1.xpose.msra.mxu0 0.0
        %319 = vmatprep.subr.mxu0 0.0
        %320 = vmatpush1.xpose.msra.mxu0 0.0
        %321 = vmatprep.subr.mxu0 0.0
        %322 = vmatpush1.xpose.msra.mxu0 0.0
        %323 = vmatprep.subr.mxu0 0.0
        %324 = vmatpush1.xpose.msra.mxu0 0.0
        %325 = vmatprep.subr.mxu0 0.0
        %326 = vmatpush1.xpose.msra.mxu0 0.0
        %327 = vmatprep.subr.mxu0 0.0
        %328 = vmatpush1.xpose.msra.mxu0 0.0
        %329 = vmatprep.subr.mxu0 0.0
        %330 = vmatpush1.xpose.msra.mxu0 0.0
        %331 = vmatprep.subr.mxu0 0.0
        %332 = vmatpush1.xpose.msra.mxu0 0.0
        %333 = vmatprep.subr.mxu0 0.0
        %334 = vmatpush1.xpose.msra.mxu0 0.0
        %335 = vmatprep.subr.mxu0 0.0
        %336 = vmatpush1.xpose.msra.mxu0 0.0
        %337 = vmatprep.mubr.f32.mxu0 0.0
        %338 = vmatmul.mubr.f32.gmra.mrb[0].mxu0 %v267
        %v339 = vpop.f32.mrb[0].mxu0
        %v340 = vadd.f32 0.0, %v339
        %v341 = vpop.f32.mrb[0].mxu0
        %342 = vdwg.mxu0
        %v343 = vadd.f32 %v272, %v340
        %vm344 = vcmask 130048
        %345 = vst.msk [vmem:[#allocation2] sm:$0xff] %vm344, %v343
        %v346 = vld [vmem:[#allocation3] sm:$0xff]
        %347 = vadd.xlane.f32.xlu0 %v267
        %v348 = vpop.xlane.xlu0 %347
        %v349 = vadd.f32 %v346, %v348
        %vm350 = vcmask 7168
        %351 = vst.msk [vmem:[#allocation3] sm:$0xff] %vm350, %v349
        %p352 = scmp.eq.s32.totalorder %s16, 2
        // Predicated region
        $region82: #{forward.1} parent=72 // pred_check
          %p353 = pneg %p352
        $region83: #{forward.1} parent=72 // pred_check_branch
          %355 = sbr.rel (%p353) target = $region85
        $region84: #{forward.1} parent=72 // pred_region
          %v356 = vld [vmem:[#allocation2] sm:$0xff]
          %v357 = vld [vmem:[#allocation3] sm:$0xff]
          %v358 = vld [vmem:[%s2] sm:$0xff]
          %v359 = vmul.f32 %v358, %v356
          %v360 = vsel %vm344, %v359, 0.0
          %361 = vadd.xlane.f32.xlu0 %v360
          %v362 = vpop.xlane.xlu0 %361
          %v363 = vmul.f32 %v357, 16.0
          %v364 = vadd.f32 %v362, %v363
          %v365 = vmul.f32 %v364, 0.03125
          %v366 = vsub.f32 %v357, %v365
          %v367 = vadd.f32 %v366, %v365
          %v368 = vrcp.pop %v367
          %v369 = vmul.f32 %v365, %v368
          %vm370 = vcmp.ne.f32.partialorder %v369, 0.0
          %v371 = vlog2.pop %v369
          %v372 = vmul.f32 %v371, 0.6931472
          %v373 = vsel %vm370, %v372, 0.0
          %v374 = vsel %vm350, %v373, 0.0
          %v375 = vrot.slane %v374, 4
          %v376 = vadd.f32 %v374, %v375
          %v377 = vrot.slane %v376, 2
          %v378 = vadd.f32 %v376, %v377
          %v379 = vrot.slane %v378, 1
          %v380 = vadd.f32 %v378, %v379
          %v381 = vsub.f32 0.0, %v380
          %v382 = vrcp.pop 8.0
          %v383 = vmul.f32 %v381, %v382
          %vm384 = vcmask 0
          %385 = vst.msk [vmem:[#allocation5] sm:$0x1] %vm384, %v383
        $region85: #{forward.1} parent=72 // pred_fallthru
          _
        // Predicated region
        $region86: #{forward.1} parent=72 // pred_check
          %p386 = pneg %p123
        $region87: #{forward.1} parent=72 // pred_check_branch
          %388 = sbr.rel (%p386) target = $region89
        $region88: #{forward.1} parent=72 // pred_region
          %s390 = ssub.s32 16, 16
          %391 = vsyncadd [#allocation6], %s390
          %s393 = sshll.u32 [#allocation5], 4
          %s394 = int_to_ptr.vmem [resolvable:$true] %s393
          %396 = dma.vmem_to_hbm [thread:$0]  %s394, 16, %s4, [#allocation6]
        $region89: #{forward.1} parent=72 // pred_fallthru
          _
        // Predicated region
        $region90: #{forward.1} parent=72 // pred_check
          %p397 = pneg %p123
        $region91: #{forward.1} parent=72 // pred_check_branch
          %399 = sbr.rel (%p397) target = $region93
        $region92: #{forward.1} parent=72 // pred_region
          %400 = dma.done [#allocation6], 16
        $region93: #{forward.1} parent=72 // pred_fallthru
          _
      $region73: #{forward.1} parent=5 // pred_fallthru
        _
      %p401 = scmp.le.s32.totalorder 2, %s11
      // Predicated region
      $region94: #{forward.1} parent=5 // pred_check
        %p402 = pneg %p401
      $region95: #{forward.1} parent=5 // pred_check_branch
        %404 = sbr.rel (%p402) target = $region97
      $region96: #{forward.1} parent=5 // pred_region
        %s405 = ssub.s32 %s11, 2
      $region97: #{forward.1} parent=5 // pred_fallthru
        _
    $region6: #{forward.1} parent=1 // loop_footer
      %s15 = sadd.s32 1, %s11
    $region7: #{forward.1} parent=1 // loop_footer_branch
      %10 = sbr.rel target = $region3
    $region8: #{forward.1} parent=1 // loop_exit
      _
    %406 = vsyncpa [#allocation6], 1
    %s407 = scalar_lea.sflag [#allocation6], 1
    %408 = vsyncpa %s407, 1

</llo_original>
